<compile_context>
chip_gen: v5e
topology: v5e:2x2
jax: 0.10.0
libtpu: 0.0.40
codegen_flags: <defaults>
</compile_context>

<pallas_src>
import functools

import jax
import jax.numpy as jnp
import numpy as np
from jax.experimental import pallas as pl
from jax.experimental.pallas import tpu as pltpu

SCALE_FACTOR = 10.0
TAU = 1.0
EPS = 1e-5


def _round_up(x, m):
    return ((x + m - 1) // m) * m


def _cdiv(a, b):
    return (a + b - 1) // b


def _vmem_capacity_bytes():
    try:
        return int(pltpu.get_tpu_info().vmem_capacity_bytes)
    except Exception:
        return 64 * 1024 * 1024  # conservative fallback (v7x per-TC VMEM)


def _scores_kernel(x_ref, w_ref, o_ref, *, normalize):
    """One (tm, D) row tile  @  one (D, tn) weight tile  ->  (tm, tn) scores.

    x_ref: (tm, D)   input rows
    w_ref: (D, tn)   effective (weight-normed) weight, pre-transposed, zero-padded cols
    o_ref: (tm, tn)  10/tau * (x_n @ W_eff.T) tile
    """
    x = x_ref[...]
    if normalize:
        # 2D path: row-normalize before the matmul, like the reference.
        # Norm math in f32 regardless of input dtype (v5e VPU has no bf16).
        xf = x.astype(jnp.float32)
        norm = jnp.sqrt(jnp.sum(xf * xf, axis=1, keepdims=True))        # (tm, 1)
        xin = (xf * (1.0 / (norm + EPS))).astype(x.dtype)
    else:
        # 3D path: raw matmul; per-i row divisors are applied outside.
        xin = x

    # (tm, D) @ (D, tn): MXU-native orientation, no weight transpose per step.
    scores = jnp.dot(xin, w_ref[...], preferred_element_type=jnp.float32)
    o_ref[...] = ((SCALE_FACTOR / TAU) * scores).astype(o_ref.dtype)


def _pallas_scores(x2d, w_eff_t, *, normalize, out_dtype):
    """x2d: [M, D]; w_eff_t: [D, C] (already g*v/||v||, transposed).

    Returns scores [M, C] in out_dtype.
    """
    M, D = x2d.shape
    C = w_eff_t.shape[1]

    in_bytes = jnp.dtype(x2d.dtype).itemsize
    out_bytes = jnp.dtype(out_dtype).itemsize
    w_bytes = in_bytes  # weight is cast to the compute dtype (= x.dtype)

    d_lane = _round_up(D, 128)  # x-tile lane footprint in VMEM
    d_sub = _round_up(D, 8)     # weight-tile sublane footprint in VMEM

    vmem_cap = _vmem_capacity_bytes()
    budget = int(0.45 * vmem_cap)  # leave headroom for compiler-internal scratch

    # --- pick tn (class-dim tile, multiple of 128, lane-dense output stores) ---
    c_pad0 = _round_up(C, 128)
    tn_cap = 512
    while tn_cap > 128 and 2 * d_sub * tn_cap * w_bytes > budget // 3:
        tn_cap //= 2
    if c_pad0 <= tn_cap:
        tn = c_pad0
    else:
        tn = tn_cap
    c_pad = _round_up(C, tn)
    c_tiles = c_pad // tn

    # --- pick tm from the VMEM budget (double-buffered x tile + out tile) ---
    per_row = 2 * d_lane * in_bytes + 2 * tn * out_bytes
    fixed = 2 * d_sub * tn * w_bytes
    tm = max(8, min(1024, (budget - fixed) // per_row))
    tm = (tm // 8) * 8
    tm = min(tm, _round_up(M, 8))
    # Minimize row-padding waste: re-derive tm from the implied tile count.
    m_tiles = _cdiv(M, tm)
    tm = _round_up(_cdiv(M, m_tiles), 8)
    m_tiles = _cdiv(M, tm)
    # v7x has 2 TensorCores: make sure a "parallel" axis has >= 2 steps.
    if m_tiles * c_tiles < 2 and M > 8:
        tm = _round_up(_cdiv(M, 2), 8)
        m_tiles = _cdiv(M, tm)
    m_pad = m_tiles * tm

    # --- pad operands (zero rows -> zero norms/scores; sliced off below) ---
    if m_pad != M:
        x2d = jnp.pad(x2d, ((0, m_pad - M), (0, 0)))
    w = w_eff_t.astype(x2d.dtype)
    if c_pad != C:
        w = jnp.pad(w, ((0, 0), (0, c_pad - C)))  # padded AFTER g*v/||v||: zeros, not NaN

    needed = (2 * tm * d_lane * in_bytes
              + 2 * tm * tn * out_bytes
              + 2 * d_sub * tn * w_bytes)
    vmem_limit = int(min(0.95 * vmem_cap, max(2 * needed + (8 << 20), 32 << 20)))

    # TODO(synk): when c_tiles == 1 the weight block index is constant; a
    # pipeline_mode=pl.Buffered(1) on its BlockSpec would save one weight buffer.
    scores = pl.pallas_call(
        functools.partial(_scores_kernel, normalize=normalize),
        out_shape=jax.ShapeDtypeStruct((m_pad, c_pad), out_dtype),
        grid_spec=pltpu.PrefetchScalarGridSpec(
            num_scalar_prefetch=0,
            grid=(m_tiles, c_tiles),
            in_specs=[
                pl.BlockSpec((tm, D), lambda i, j: (i, 0)),   # x row tile (re-used across j)
                pl.BlockSpec((D, tn), lambda i, j: (0, j)),   # pre-transposed W_eff tile
            ],
            out_specs=pl.BlockSpec((tm, tn), lambda i, j: (i, j)),  # lane-dense scores
        ),
        compiler_params=pltpu.CompilerParams(
            dimension_semantics=("parallel", "parallel"),
            vmem_limit_bytes=vmem_limit,
        ),
    )(x2d, w)
    return scores[:M, :C]


def _effective_weight_t(weight_v, weight_g):
    """W_eff.T = (g * v / ||v||_row).T, hoisted out of the grid loop.

    Faithful to torch weight_norm: no epsilon (an all-zero v row -> NaN).
    Returned as (D, C): MXU-native RHS orientation, lane dim = C.
    """
    v = weight_v.astype(jnp.float32)
    g = weight_g.astype(jnp.float32).reshape(-1, 1)
    w = g * v / jnp.sqrt(jnp.sum(v * v, axis=1, keepdims=True))   # (C, D)
    return w.T                                                    # (D, C)


def dist_linear_forward(x, weight_v, weight_g, out_dtype=None):
    """Forward of distLinear for 2D [N, D] or 3D [B, S, D] inputs."""
    out_dtype = jnp.dtype(out_dtype) if out_dtype is not None else jnp.dtype(x.dtype)
    w_t = _effective_weight_t(weight_v, weight_g)

    if x.ndim == 3:
        b, s, d = x.shape
        x2d = x.reshape(b * s, d)
        # The matmul is identical for every i in the reference loop; only the
        # row divisor changes.  One Pallas pass gives raw scores; the B
        # different scalings are a cheap broadcast multiply in XLA.
        raw = _pallas_scores(x2d, w_t, normalize=False, out_dtype=out_dtype)
        raw = raw.reshape(b, s, -1)                               # (B, S, C)
        xf = x.astype(jnp.float32)
        inv = 1.0 / (jnp.sqrt(jnp.sum(xf * xf, axis=-1)) + EPS)   # (B, S) = 1/(||x[i,s]||+eps)
        # out[i, b, s, c] = raw[b, s, c] * inv[i, s]   (reference expand_as quirk)
        out = raw.astype(jnp.float32)[None, :, :, :] * inv[:, None, :, None]
        return out.astype(out_dtype)
    else:
        return _pallas_scores(x, w_t, normalize=True, out_dtype=out_dtype)


def _ref_forward_np(x, weight_v, weight_g):
    """Pure-numpy (float64) reference mirroring the PyTorch code."""
    x = np.asarray(x, np.float64)
    v = np.asarray(weight_v, np.float64)
    g = np.asarray(weight_g, np.float64).reshape(-1, 1)
    w = g * v / np.linalg.norm(v, axis=1, keepdims=True)
    if x.ndim == 3:
        outs = []
        for i in range(x.shape[0]):
            n = np.linalg.norm(x[i], axis=1, keepdims=True)          # (S, 1)
            xn = x / (n[None] + EPS) / TAU                           # expand_as quirk
            outs.append(SCALE_FACTOR * np.einsum("bsd,cd->bsc", xn, w))
        return np.stack(outs)
    n = np.linalg.norm(x, axis=1, keepdims=True)
    xn = x / (n + EPS) / TAU
    return SCALE_FACTOR * (xn @ w.T)


if __name__ == "__main__":
    indim, outdim = 32, 16
    batch, num_samples = 2, 8

    key = jax.random.PRNGKey(0)
    k_w, k_x3, k_x2, k_big = jax.random.split(key, 4)

    # Deterministic init mimicking nn.Linear + WeightNorm:
    # weight_v = raw weight, weight_g = per-row L2 norm of weight_v.
    bound = 1.0 / np.sqrt(indim)
    weight_v = jax.random.uniform(k_w, (outdim, indim), jnp.float32, -bound, bound)
    weight_g = jnp.linalg.norm(weight_v, axis=1, keepdims=True)       # (outdim, 1)

    # Tolerance accommodates MXU f32 pass decomposition at default matmul precision.
    RTOL = ATOL = 1e-2

    # 3D path (batch, num_samples, features) -> (batch, batch, num_samples, outdim)
    x3 = jax.random.normal(k_x3, (batch, num_samples, indim), jnp.float32)
    out3 = jax.block_until_ready(dist_linear_forward(x3, weight_v, weight_g))
    ref3 = _ref_forward_np(x3, weight_v, weight_g)
    assert out3.shape == (batch, batch, num_samples, outdim)
    np.testing.assert_allclose(np.asarray(out3), ref3, rtol=RTOL, atol=ATOL)

    # 2D path (N, features)
    x2 = jax.random.normal(k_x2, (batch * num_samples, indim), jnp.float32)
    out2 = jax.block_until_ready(dist_linear_forward(x2, weight_v, weight_g))
    ref2 = _ref_forward_np(x2, weight_v, weight_g)
    assert out2.shape == (batch * num_samples, outdim)
    np.testing.assert_allclose(np.asarray(out2), ref2, rtol=RTOL, atol=ATOL)

    # 2D path, multi-tile: exercises waste-minimized tm tiling + row padding.
    xb = jax.random.normal(k_big, (1500, indim), jnp.float32)
    outb = jax.block_until_ready(dist_linear_forward(xb, weight_v, weight_g))
    refb = _ref_forward_np(xb, weight_v, weight_g)
    assert outb.shape == (1500, outdim)
    np.testing.assert_allclose(np.asarray(outb), refb, rtol=RTOL, atol=ATOL)

    print("KERNEL_OK")
</pallas_src>

<mosaic_0001>
module attributes {stable_mosaic.version = 11 : i64} {
  func.func @_scores_kernel(%arg0: i32, %arg1: i32, %arg2: memref<8x32xf32, #tpu.memory_space<vmem>>, %arg3: memref<32x128xf32, #tpu.memory_space<vmem>>, %arg4: memref<8x128xf32, #tpu.memory_space<vmem>>) attributes {dimension_semantics = [#tpu.dimension_semantics<parallel>, #tpu.dimension_semantics<parallel>], iteration_bounds = array<i64: 2, 1>, scalar_prefetch = 0 : i64, scratch_operands = 0 : i64, tpu.core_type = #tpu.core_type<tc>, window_params = [{transform_indices = @transform_0, window_bounds = array<i64: 8, 32>}, {transform_indices = @transform_1, window_bounds = array<i64: 32, 128>}, {transform_indices = @transform_2, window_bounds = array<i64: 8, 128>}]} {
    %c0 = arith.constant 0 : index
    %c0_0 = arith.constant 0 : index
    %0 = vector.load %arg2[%c0, %c0_0] : memref<8x32xf32, #tpu.memory_space<vmem>>, vector<8x32xf32>
    %c0_1 = arith.constant 0 : index
    %c0_2 = arith.constant 0 : index
    %1 = vector.load %arg3[%c0_1, %c0_2] : memref<32x128xf32, #tpu.memory_space<vmem>>, vector<32x128xf32>
    %cst = arith.constant dense<0.000000e+00> : vector<8x128xf32>
    %2 = tpu.matmul %0, %1, %cst {dimension_numbers = #tpu.dot_dimension_numbers<[1], [0], [0], [1], [0, 0, 1, 1], [], []>} : vector<8x32xf32>, vector<32x128xf32>, vector<8x128xf32> -> vector<8x128xf32>
    %cst_3 = arith.constant 1.000000e+01 : f32
    %3 = vector.broadcast %cst_3 : f32 to vector<8x128xf32>
    %4 = arith.mulf %3, %2 : vector<8x128xf32>
    %c0_4 = arith.constant 0 : index
    %c0_5 = arith.constant 0 : index
    %5 = vector.load %arg4[%c0_4, %c0_5] : memref<8x128xf32, #tpu.memory_space<vmem>>, vector<8x128xf32>
    tpu.vector_store %arg4[%c0_4, %c0_5], %4 {strides = array<i32>} : memref<8x128xf32, #tpu.memory_space<vmem>>, vector<8x128xf32>,
    return
  }
  func.func @transform_0(%arg0: i32, %arg1: i32) -> (i32, i32) {
    %c0_i32 = arith.constant 0 : i32
    %c0_i32_0 = arith.constant 0 : i32
    return %arg0, %c0_i32 : i32, i32
  }
  func.func @transform_1(%arg0: i32, %arg1: i32) -> (i32, i32) {
    %c0_i32 = arith.constant 0 : i32
    %c0_i32_0 = arith.constant 0 : i32
    return %c0_i32, %arg1 : i32, i32
  }
  func.func @transform_2(%arg0: i32, %arg1: i32) -> (i32, i32) {
    %c0_i32 = arith.constant 0 : i32
    return %arg0, %arg1 : i32, i32
  }
}

</mosaic_0001>

<llo_original>
// kernel: tpu_custom_call.1
$region0: #{tpu_custom_call.1}
  #allocation0 [shape = 'u32[]', space=smem, size = 0x4, offset = 0x4, fixed_abs, tag = 'smem constant byte address 0x4 - core index']
  #allocation1 [shape = 'u32[72,128]{1,0:T(1,128)}', space=vmem, size = 0x9000, scoped, tag = 'internal scratch']
  %s0 = inlined_call_operand.hbm [shape: f32[16,32], index: 0, kind: input, shape index: {}]
  %s1 = inlined_call_operand.hbm [shape: f32[32,128], index: 1, kind: input, shape index: {}]
  %s2 = inlined_call_operand.hbm [shape: f32[16,128], index: 2, kind: output, shape index: {}]
  %s3 = sld [smem:[#allocation0]]
  $region49: #{tpu_custom_call.1} parent=0
    _
  %s5 = ssub.s32 1, %s3
  %s6 = scalar_select 0, %s5, %s3
  $region1: #{tpu_custom_call.1} parent=0
    #allocation2 [shape = 'u8[8192]{0}', space=vmem, size = 0x2000, scoped, tag = 'input window, operand 0']
    #allocation3 [shape = 's32[2]{0}', space=sflag, size = 0x8, scoped, tag = 'scoped memory for tpu_custom_call.1']
    #allocation4 [shape = 's32[2]{0}', space=sflag, size = 0x8, scoped, tag = 'scoped memory for tpu_custom_call.1']
    #allocation5 [shape = 'u8[16384]{0}', space=vmem, size = 0x4000, scoped, tag = 'input window, operand 1, single buffered']
    #allocation6 [shape = 's32[1]{0}', space=sflag, size = 0x4, scoped, tag = 'scoped memory for tpu_custom_call.1']
    #allocation7 [shape = 'u8[8192]{0}', space=vmem, size = 0x2000, scoped, tag = 'output window, operand 0']
    %7 = vsyncpa [#allocation3], 0
    %s8 = scalar_lea.sflag [#allocation3], 1
    %9 = vsyncpa %s8, 0
    %10 = vsyncpa [#allocation6], 0
    %11 = vsyncpa [#allocation4], 0
    %s12 = scalar_lea.sflag [#allocation4], 1
    %13 = vsyncpa %s12, 0
    loop: start=0, step=1, limit=4
    $region2: #{tpu_custom_call.1} parent=1 // loop_pre_header
      _
    $region3: #{tpu_custom_call.1} parent=1 // loop_header
      %s15 = sphi 0, %s19
      %p16 = scmp.ge.s32.totalorder %s15, 4
      %s22 = sphi 0, %s34
      %s23 = sphi 0, %s30
      %s24 = sphi 0, %s22
      %s25 = sphi 0, %s23
      %s26 = sphi 0, %s24
      %s27 = sphi 0, %s25
      %s37 = sphi 0, %s39
      %s40 = sphi 0, %s37
      %s41 = sphi 0, %s40
      %s57 = sphi 0, %s41
      %s63 = sphi 0, %s65
      %s66 = sphi 0, %s63
      %s67 = sphi 0, %s66
      %s83 = sphi 0, %s67
      %s91 = sphi 0, %s93
      %s94 = sphi 0, %s91
      %s95 = sphi 0, %s94
      %s111 = sphi 0, %s95
    $region4: #{tpu_custom_call.1} parent=1 // loop_header_branch
      %18 = sbr.rel (%p16) target = $region8
    $region5: #{tpu_custom_call.1} parent=1 // loop_body
      %s20 = ssub.s32 %s15, 1
      %s21 = ssub.s32 %s15, 2
      %s28 = sadd.s32 1, %s23
      %p29 = scmp.ge.s32.totalorder %s28, 1
      %s30 = scalar_select %p29, 0, %s28
      %s31 = sadd.s32 1, %s22
      %s32 = scalar_select %p29, %s31, %s22
      %p33 = scmp.ge.s32.totalorder %s32, 2
      %s34 = scalar_select %p33, 0, %s32
      %s35 = ssub.s32 %s22, %s34
      %p36 = scmp.eq.s32.totalorder %s35, 0
      %s38 = sadd.s32 %s37, 1
      %s39 = scalar_select %p36, %s37, %s38
      %p42 = pneg %p36
      %p43 = scmp.eq.s32.totalorder %s15, 1
      %p44 = por %p42, %p43
      %p45 = scmp.ne.s32.totalorder %s37, %s40
      %p46 = scmp.eq.s32.totalorder %s15, 0
      %p47 = por %p45, %p46
      %p48 = scmp.ne.s32.totalorder %s37, %s40
      %p49 = scmp.eq.s32.totalorder %s20, 1
      %p50 = por %p48, %p49
      %p51 = scmp.ne.s32.totalorder %s40, %s41
      %p52 = scmp.eq.s32.totalorder %s20, 0
      %p53 = por %p51, %p52
      %p54 = scmp.ne.s32.totalorder %s40, %s41
      %p55 = scmp.eq.s32.totalorder %s21, 1
      %p56 = por %p54, %p55
      %p58 = scmp.ne.s32.totalorder %s41, %s57
      %p59 = scmp.eq.s32.totalorder %s21, 0
      %p60 = por %p58, %p59
      %s61 = ssub.s32 %s23, %s30
      %p62 = scmp.eq.s32.totalorder %s61, 0
      %s64 = sadd.s32 %s63, 1
      %s65 = scalar_select %p62, %s63, %s64
      %p68 = pneg %p62
      %p69 = scmp.eq.s32.totalorder %s15, 1
      %p70 = por %p68, %p69
      %p71 = scmp.ne.s32.totalorder %s63, %s66
      %p72 = scmp.eq.s32.totalorder %s15, 0
      %p73 = por %p71, %p72
      %p74 = scmp.ne.s32.totalorder %s63, %s66
      %p75 = scmp.eq.s32.totalorder %s20, 1
      %p76 = por %p74, %p75
      %p77 = scmp.ne.s32.totalorder %s66, %s67
      %p78 = scmp.eq.s32.totalorder %s20, 0
      %p79 = por %p77, %p78
      %p80 = scmp.ne.s32.totalorder %s66, %s67
      %p81 = scmp.eq.s32.totalorder %s21, 1
      %p82 = por %p80, %p81
      %p84 = scmp.ne.s32.totalorder %s67, %s83
      %p85 = scmp.eq.s32.totalorder %s21, 0
      %p86 = por %p84, %p85
      %s87 = ssub.s32 %s22, %s34
      %s88 = ssub.s32 %s23, %s30
      %s89 = sor.u32 %s87, %s88
      %p90 = scmp.eq.s32.totalorder %s89, 0
      %s92 = sadd.s32 %s91, 1
      %s93 = scalar_select %p90, %s91, %s92
      %p96 = pneg %p90
      %p97 = scmp.eq.s32.totalorder %s15, 1
      %p98 = por %p96, %p97
      %p99 = scmp.ne.s32.totalorder %s91, %s94
      %p100 = scmp.eq.s32.totalorder %s15, 0
      %p101 = por %p99, %p100
      %p102 = scmp.ne.s32.totalorder %s91, %s94
      %p103 = scmp.eq.s32.totalorder %s20, 1
      %p104 = por %p102, %p103
      %p105 = scmp.ne.s32.totalorder %s94, %s95
      %p106 = scmp.eq.s32.totalorder %s20, 0
      %p107 = por %p105, %p106
      %p108 = scmp.ne.s32.totalorder %s94, %s95
      %p109 = scmp.eq.s32.totalorder %s21, 1
      %p110 = por %p108, %p109
      %p112 = scmp.ne.s32.totalorder %s95, %s111
      %p113 = scmp.eq.s32.totalorder %s21, 0
      %p114 = por %p112, %p113
      %p115 = scmp.le.s32.totalorder 1, %s15
      %p116 = scmp.lt.s32.totalorder %s15, 3
      %p117 = pnand %p115, %p116
      %p118 = pneg %p117
      // Predicated region
      $region9: #{tpu_custom_call.1} parent=5 // pred_check
        _
      $region10: #{tpu_custom_call.1} parent=5 // pred_check_branch
        %120 = sbr.rel (%p117) target = $region12
      $region11: #{tpu_custom_call.1} parent=5 // pred_region
        %s121 = ssub.s32 %s15, 1
        // Predicated region
        $region13: #{tpu_custom_call.1} parent=11 // pred_check
          %p122 = pneg %p79
        $region14: #{tpu_custom_call.1} parent=11 // pred_check_branch
          %124 = sbr.rel (%p122) target = $region16
        $region15: #{tpu_custom_call.1} parent=11 // pred_region
          %126 = vsyncadd [#allocation6], 0
          %s127 = smul.addr %s25, 8
          %s128 = scalar_lea.hbm %s1, %s127
          %s129 = sshll.u32 %s128, 4
          %s130 = int_to_ptr.hbm [resolvable:$true] %s129
          %s131 = sshll.u32 [#allocation5], 4
          %s132 = int_to_ptr.vmem [resolvable:$true] %s131
          %137 = dma.hbm_to_vmem [thread:$0]  %s130, 512, %s132, [#allocation6], 128, 128, 8
        $region16: #{tpu_custom_call.1} parent=11 // pred_fallthru
          _
      $region12: #{tpu_custom_call.1} parent=5 // pred_fallthru
        _
      %p138 = scmp.lt.s32.totalorder %s15, 2
      // Predicated region
      $region17: #{tpu_custom_call.1} parent=5 // pred_check
        %p139 = pneg %p138
      $region18: #{tpu_custom_call.1} parent=5 // pred_check_branch
        %141 = sbr.rel (%p139) target = $region20
      $region19: #{tpu_custom_call.1} parent=5 // pred_region
        // Predicated region
        $region21: #{tpu_custom_call.1} parent=19 // pred_check
          %p142 = pneg %p47
        $region22: #{tpu_custom_call.1} parent=19 // pred_check_branch
          %144 = sbr.rel (%p142) target = $region24
        $region23: #{tpu_custom_call.1} parent=19 // pred_region
          %s145 = sand.u32 %s37, 1
          %s146 = scalar_lea.sflag [#allocation3], %s145
          %s147 = sand.u32 %s37, 1
          %s148 = smul.addr %s147, 8
          %s149 = scalar_lea.vmem [#allocation2], %s148
          %151 = vsyncadd %s146, 0
          %s152 = smul.addr %s22, 8
          %s153 = scalar_lea.hbm %s0, %s152
          %s155 = sshll.u32 %s153, 4
          %s156 = int_to_ptr.hbm [resolvable:$true] %s155
          %s157 = sshll.u32 %s149, 4
          %s158 = int_to_ptr.vmem [resolvable:$true] %s157
          %160 = dma.hbm_to_vmem [thread:$0]  %s156, 128, %s158, %s146
        $region24: #{tpu_custom_call.1} parent=19 // pred_fallthru
          _
      $region20: #{tpu_custom_call.1} parent=5 // pred_fallthru
        _
      %p161 = scmp.le.s32.totalorder 1, %s15
      %p162 = scmp.lt.s32.totalorder %s15, 3
      %p163 = pnand %p161, %p162
      %p164 = pneg %p163
      // Predicated region
      $region25: #{tpu_custom_call.1} parent=5 // pred_check
        _
      $region26: #{tpu_custom_call.1} parent=5 // pred_check_branch
        %166 = sbr.rel (%p163) target = $region28
      $region27: #{tpu_custom_call.1} parent=5 // pred_region
        %s167 = ssub.s32 %s15, 1
        %s168 = sand.u32 %s40, 1
        %s169 = scalar_lea.sflag [#allocation3], %s168
        %s170 = sand.u32 %s40, 1
        %s171 = smul.addr %s170, 8
        %s172 = scalar_lea.vmem [#allocation2], %s171
        // Predicated region
        $region29: #{tpu_custom_call.1} parent=27 // pred_check
          %p173 = pneg %p53
        $region30: #{tpu_custom_call.1} parent=27 // pred_check_branch
          %175 = sbr.rel (%p173) target = $region32
        $region31: #{tpu_custom_call.1} parent=27 // pred_region
          %177 = dma.done %s169, 128
        $region32: #{tpu_custom_call.1} parent=27 // pred_fallthru
          _
        // Predicated region
        $region33: #{tpu_custom_call.1} parent=27 // pred_check
          %p178 = pneg %p79
        $region34: #{tpu_custom_call.1} parent=27 // pred_check_branch
          %180 = sbr.rel (%p178) target = $region36
        $region35: #{tpu_custom_call.1} parent=27 // pred_region
          %182 = dma.done [#allocation6], 512
        $region36: #{tpu_custom_call.1} parent=27 // pred_fallthru
          _
        %s183 = sand.u32 %s40, 1
        %s184 = scalar_lea.sflag [#allocation3], %s183
        %s185 = sand.u32 %s40, 1
        %s186 = smul.addr %s185, 8
        %s187 = scalar_lea.vmem [#allocation2], %s186
        %p188 = pneg %p53
        %p189 = pneg %p50
        %p190 = pneg %p79
        %p191 = pneg %p76
        %p192 = pneg %p107
        %p193 = pneg %p104
        %s194 = sand.u32 %s94, 1
        %s195 = scalar_lea.sflag [#allocation4], %s194
        %s196 = sand.u32 %s94, 1
        %s197 = smul.addr %s196, 8
        %s198 = scalar_lea.vmem [#allocation7], %s197
        %v199 = vld [vmem:[%s172] sm:$0xff]
        %v200 = vld [vmem:[#allocation5] sm:$0xff]
        %v201 = vld [vmem:[#allocation5 + $0x8] sm:$0xff]
        %v202 = vld [vmem:[#allocation5 + $0x10] sm:$0xff]
        %v203 = vld [vmem:[#allocation5 + $0x18] sm:$0xff]
        %vm204 = vcmask 261120
        %v206 = vsel %vm204, %v199, 0
        %208 = vmatpush.msra.mxu0 0.0
        %209 = vmatpush.msra.mxu0 0.0
        %210 = vmatpush.msra.mxu0 0.0
        %211 = vmatpush.msra.mxu0 0.0
        %212 = vmatpush.msra.mxu0 0.0
        %213 = vmatpush.msra.mxu0 0.0
        %214 = vmatpush.msra.mxu0 0.0
        %215 = vmatpush.msra.mxu0 0.0
        %216 = vmatpush.msra.mxu0 0.0
        %217 = vmatpush.msra.mxu0 0.0
        %218 = vmatpush.msra.mxu0 0.0
        %219 = vmatpush.msra.mxu0 0.0
        %220 = vmatpush.msra.mxu0 %v203
        %221 = vmatpush.msra.mxu0 %v202
        %222 = vmatpush.msra.mxu0 %v201
        %223 = vmatpush.msra.mxu0 %v200
        %224 = vmatmul.f32.gmra.mxu0 %v206
        %v225 = vpop.f32.mrf.mxu0
        %v226 = vadd.f32 0.0, %v225
        %227 = vdwg.mxu0
        %v228 = vmul.f32 %v226, 10.0
        %229 = vst [vmem:[%s198] sm:$0xff] %v228
        %s230 = sand.u32 %s94, 1
        %s231 = scalar_lea.sflag [#allocation4], %s230
        %s232 = sand.u32 %s94, 1
        %s233 = smul.addr %s232, 8
        %s234 = scalar_lea.vmem [#allocation7], %s233
        // Predicated region
        $region37: #{tpu_custom_call.1} parent=27 // pred_check
          %p235 = pneg %p104
        $region38: #{tpu_custom_call.1} parent=27 // pred_check_branch
          %237 = sbr.rel (%p235) target = $region40
        $region39: #{tpu_custom_call.1} parent=27 // pred_region
          %239 = vsyncadd %s231, 0
          %s240 = sadd.s32 %s25, %s24
          %s241 = smul.addr %s240, 8
          %s242 = scalar_lea.hbm %s2, %s241
          %s244 = sshll.u32 %s234, 4
          %s245 = int_to_ptr.vmem [resolvable:$true] %s244
          %s246 = sshll.u32 %s242, 4
          %s247 = int_to_ptr.hbm [resolvable:$true] %s246
          %249 = dma.vmem_to_hbm [thread:$0]  %s245, 128, %s247, %s231
        $region40: #{tpu_custom_call.1} parent=27 // pred_fallthru
          _
      $region28: #{tpu_custom_call.1} parent=5 // pred_fallthru
        _
      %p250 = scmp.le.s32.totalorder 2, %s15
      // Predicated region
      $region41: #{tpu_custom_call.1} parent=5 // pred_check
        %p251 = pneg %p250
      $region42: #{tpu_custom_call.1} parent=5 // pred_check_branch
        %253 = sbr.rel (%p251) target = $region44
      $region43: #{tpu_custom_call.1} parent=5 // pred_region
        %s254 = ssub.s32 %s15, 2
        // Predicated region
        $region45: #{tpu_custom_call.1} parent=43 // pred_check
          %p255 = pneg %p110
        $region46: #{tpu_custom_call.1} parent=43 // pred_check_branch
          %257 = sbr.rel (%p255) target = $region48
        $region47: #{tpu_custom_call.1} parent=43 // pred_region
          %s258 = sand.u32 %s95, 1
          %s259 = scalar_lea.sflag [#allocation4], %s258
          %s260 = sand.u32 %s95, 1
          %s261 = smul.addr %s260, 8
          %s262 = scalar_lea.vmem [#allocation7], %s261
          %264 = dma.done %s259, 128
        $region48: #{tpu_custom_call.1} parent=43 // pred_fallthru
          _
      $region44: #{tpu_custom_call.1} parent=5 // pred_fallthru
        _
    $region6: #{tpu_custom_call.1} parent=1 // loop_footer
      %s19 = sadd.s32 1, %s15
    $region7: #{tpu_custom_call.1} parent=1 // loop_footer_branch
      %14 = sbr.rel target = $region3
    $region8: #{tpu_custom_call.1} parent=1 // loop_exit
      _
    %265 = vsyncpa [#allocation3], 1
    %s266 = scalar_lea.sflag [#allocation3], 1
    %267 = vsyncpa %s266, 1
    %268 = vsyncpa [#allocation6], 1
    %269 = vsyncpa [#allocation4], 1
    %s270 = scalar_lea.sflag [#allocation4], 1
    %271 = vsyncpa %s270, 1

</llo_original>
